<compile_context>
chip_gen: v5e
topology: v5e:2x2
jax: 0.10.0
libtpu: 0.0.40
codegen_flags: <defaults>
</compile_context>

<pallas_src>
import jax
import jax.numpy as jnp
from jax.experimental import pallas as pl
from jax.experimental.pallas import tpu as pltpu


def gcn_kernel(a_ref, x_ref, w_ref, b_ref, o_ref):
    a = a_ref[...]                    # (Np, Np) bf16 normalized adjacency (zero-padded)
    x = x_ref[...]                    # (Np, Dp) bf16 node features (zero-padded)
    w1 = w_ref[0]                     # (Dp, Dp) bf16, valid block (F_in, H)
    w2 = w_ref[1]                     # (Dp, Dp) bf16, valid block (H, C)
    b = b_ref[...]                    # (2, Dp)  f32
    b1 = b[0:1, :]
    b2 = b[1:2, :]

    # ----- GraphConv layer 1 (weight-first): relu( A @ (X @ W1) + b1 ) -----
    xw1 = jnp.dot(x, w1, preferred_element_type=jnp.float32)                        # (Np, Dp) f32
    h = jnp.dot(a, xw1.astype(jnp.bfloat16), preferred_element_type=jnp.float32)    # (Np, Dp) f32
    h = jnp.maximum(h + b1, 0.0)

    # ----- GraphConv layer 2 (aggregate-first): ((A @ h) @ W2) + b2 -----
    ah = jnp.dot(a, h.astype(jnp.bfloat16), preferred_element_type=jnp.float32)     # (Np, Dp) f32
    out = jnp.dot(ah.astype(jnp.bfloat16), w2, preferred_element_type=jnp.float32)  # (Np, Dp) f32
    o_ref[...] = out + b2             # lane- and sublane-dense unmasked store


def _round_up(n, m):
    return pl.cdiv(n, m) * m


def _pad2d(arr, rows, cols):
    r, c = arr.shape
    return jnp.pad(arr, ((0, rows - r), (0, cols - c)))


def prepare_gcn_inputs(a_hat, x, w1, b1, w2, b2):
    """One-time prep (graph, weights, and the one-hot features are static):
    zero-pad to lane/sublane-dense shapes, cast MXU operands to bf16, and pack
    weights/biases into single slabs so the kernel gets 4 inputs instead of 6.
    Zero padding is exact: padded rows/cols contribute zeros everywhere and the
    valid (N, C) block of the output is untouched."""
    n = a_hat.shape[0]
    f_in, hidden = w1.shape
    num_classes = w2.shape[1]
    np_ = _round_up(n, 128)                              # node dim (A's lane dim too)
    dp = _round_up(max(f_in, hidden, num_classes), 128)  # shared feature/hidden/class pad

    a_pad = _pad2d(a_hat, np_, np_).astype(jnp.bfloat16)
    # NOTE: if node features vary per call, move this pad/cast into the jitted forward.
    x_pad = _pad2d(x, np_, dp).astype(jnp.bfloat16)
    w_slab = jnp.stack([_pad2d(w1, dp, dp), _pad2d(w2, dp, dp)]).astype(jnp.bfloat16)
    b_slab = jnp.concatenate([_pad2d(b1, 1, dp), _pad2d(b2, 1, dp)], axis=0).astype(jnp.float32)
    return a_pad, x_pad, w_slab, b_slab


def _gcn_pallas(a_pad, x_pad, w_slab, b_slab):
    np_ = a_pad.shape[0]
    dp = x_pad.shape[1]
    flops = 2 * (np_ * dp * dp          # X @ W1
                 + np_ * np_ * dp       # A @ (X W1)
                 + np_ * np_ * dp       # A @ h
                 + np_ * dp * dp)       # (A h) @ W2
    bytes_accessed = (a_pad.size * a_pad.dtype.itemsize
                      + x_pad.size * x_pad.dtype.itemsize
                      + w_slab.size * w_slab.dtype.itemsize
                      + b_slab.size * b_slab.dtype.itemsize
                      + np_ * dp * 4)   # f32 output
    vmem = pl.BlockSpec(memory_space=pltpu.MemorySpace.VMEM)
    return pl.pallas_call(
        gcn_kernel,
        out_shape=jax.ShapeDtypeStruct((np_, dp), jnp.float32),
        in_specs=[vmem, vmem, vmem, vmem],
        out_specs=vmem,
        cost_estimate=pl.CostEstimate(flops=flops, transcendentals=0,
                                      bytes_accessed=bytes_accessed),
    )(a_pad, x_pad, w_slab, b_slab)


# Hot path: a single Pallas custom call, nothing else.
gcn_forward_prepared = jax.jit(_gcn_pallas)


def reference_forward(a_hat, x, w1, b1, w2, b2):
    h = jnp.maximum(a_hat @ x @ w1 + b1, 0.0)
    return a_hat @ h @ w2 + b2


if __name__ == "__main__":
    # Karate-club-like sizes: 34 nodes, one-hot node features (in_feats = N),
    # small hidden layer, small number of classes.
    N = 34          # nodes
    IN_FEATS = 34   # one-hot node id features (as in the classic tutorial)
    HIDDEN = 16
    NUM_CLASSES = 4

    key = jax.random.PRNGKey(0)
    k_adj, k_w1, k_b1, k_w2, k_b2 = jax.random.split(key, 5)

    # ---- Build a deterministic undirected graph with self-loops ----
    upper = (jax.random.uniform(k_adj, (N, N)) < 0.15).astype(jnp.float32)
    upper = jnp.triu(upper, k=1)
    adj = upper + upper.T + jnp.eye(N, dtype=jnp.float32)  # symmetric, self-loops

    # Symmetric normalization A_hat = D^{-1/2} A D^{-1/2}  (DGL norm='both')
    deg = jnp.sum(adj, axis=1)
    d_inv_sqrt = 1.0 / jnp.sqrt(deg)
    a_hat = ((d_inv_sqrt[:, None] * adj) * d_inv_sqrt[None, :]).astype(jnp.float32)

    # ---- Node features: one-hot identity, as in the DGL karate-club example ----
    x = jnp.eye(N, IN_FEATS, dtype=jnp.float32)

    # ---- Deterministic Glorot-uniform-style parameter init ----
    def glorot(k, fan_in, fan_out):
        limit = jnp.sqrt(6.0 / (fan_in + fan_out))
        return jax.random.uniform(k, (fan_in, fan_out), jnp.float32, -limit, limit)

    w1 = glorot(k_w1, IN_FEATS, HIDDEN)
    b1 = (0.01 * jax.random.normal(k_b1, (1, HIDDEN))).astype(jnp.float32)
    w2 = glorot(k_w2, HIDDEN, NUM_CLASSES)
    b2 = (0.01 * jax.random.normal(k_b2, (1, NUM_CLASSES))).astype(jnp.float32)

    # One-time prep (outside the hot path): pad, cast, pack.
    a_pad, x_pad, w_slab, b_slab = prepare_gcn_inputs(a_hat, x, w1, b1, w2, b2)
    a_pad, x_pad, w_slab, b_slab = jax.block_until_ready(
        (a_pad, x_pad, w_slab, b_slab))

    out_pad = gcn_forward_prepared(a_pad, x_pad, w_slab, b_slab)
    out_pad = jax.block_until_ready(out_pad)

    # One-time slice back to logical shape (outside the hot path).
    out = out_pad[:N, :NUM_CLASSES]

    ref = reference_forward(a_hat, x, w1, b1, w2, b2)
    assert out.shape == (N, NUM_CLASSES)
    # bf16 MXU operands -> slightly looser tolerance than the pure-f32 reference.
    assert jnp.allclose(out, ref, atol=2e-2, rtol=2e-2)

    print("KERNEL_OK")
</pallas_src>

<mosaic_0001>
module attributes {stable_mosaic.version = 11 : i64} {
  func.func @gcn_kernel(%arg0: memref<128x128xbf16, #tpu.memory_space<vmem>>, %arg1: memref<128x128xbf16, #tpu.memory_space<vmem>>, %arg2: memref<2x128x128xbf16, #tpu.memory_space<vmem>>, %arg3: memref<2x128xf32, #tpu.memory_space<vmem>>, %arg4: memref<128x128xf32, #tpu.memory_space<vmem>>) attributes {dimension_semantics = [], scalar_prefetch = 0 : i64, scratch_operands = 0 : i64, tpu.core_type = #tpu.core_type<tc>} {
    %c0 = arith.constant 0 : index
    %c0_0 = arith.constant 0 : index
    %0 = vector.load %arg0[%c0, %c0_0] : memref<128x128xbf16, #tpu.memory_space<vmem>>, vector<128x128xbf16>
    %c0_1 = arith.constant 0 : index
    %c0_2 = arith.constant 0 : index
    %1 = vector.load %arg1[%c0_1, %c0_2] : memref<128x128xbf16, #tpu.memory_space<vmem>>, vector<128x128xbf16>
    %c0_3 = arith.constant 0 : index
    %c0_4 = arith.constant 0 : index
    %c0_5 = arith.constant 0 : index
    %2 = vector.load %arg2[%c0_3, %c0_4, %c0_5] : memref<2x128x128xbf16, #tpu.memory_space<vmem>>, vector<1x128x128xbf16>
    %3 = vector.shape_cast %2 : vector<1x128x128xbf16> to vector<128x128xbf16>
    %c1 = arith.constant 1 : index
    %c0_6 = arith.constant 0 : index
    %c0_7 = arith.constant 0 : index
    %4 = vector.load %arg2[%c1, %c0_6, %c0_7] : memref<2x128x128xbf16, #tpu.memory_space<vmem>>, vector<1x128x128xbf16>
    %5 = vector.shape_cast %4 : vector<1x128x128xbf16> to vector<128x128xbf16>
    %c0_8 = arith.constant 0 : index
    %c0_9 = arith.constant 0 : index
    %6 = vector.load %arg3[%c0_8, %c0_9] : memref<2x128xf32, #tpu.memory_space<vmem>>, vector<2x128xf32>
    %7 = vector.extract_strided_slice %6 {offsets = [0, 0], sizes = [1, 128], strides = [1, 1]} : vector<2x128xf32> to vector<1x128xf32>
    %8 = vector.extract_strided_slice %6 {offsets = [1, 0], sizes = [1, 128], strides = [1, 1]} : vector<2x128xf32> to vector<1x128xf32>
    %cst = arith.constant dense<0.000000e+00> : vector<128x128xf32>
    %9 = tpu.matmul %1, %3, %cst {dimension_numbers = #tpu.dot_dimension_numbers<[1], [0], [0], [1], [0, 0, 1, 1], [], []>} : vector<128x128xbf16>, vector<128x128xbf16>, vector<128x128xf32> -> vector<128x128xf32>
    %10 = arith.truncf %9 : vector<128x128xf32> to vector<128x128xbf16>
    %cst_10 = arith.constant dense<0.000000e+00> : vector<128x128xf32>
    %11 = tpu.matmul %0, %10, %cst_10 {dimension_numbers = #tpu.dot_dimension_numbers<[1], [0], [0], [1], [0, 0, 1, 1], [], []>} : vector<128x128xbf16>, vector<128x128xbf16>, vector<128x128xf32> -> vector<128x128xf32>
    %12 = vector.broadcast %7 : vector<1x128xf32> to vector<128x128xf32>
    %13 = arith.addf %11, %12 : vector<128x128xf32>
    %cst_11 = arith.constant 0.000000e+00 : f32
    %14 = vector.broadcast %cst_11 : f32 to vector<128x128xf32>
    %15 = arith.maximumf %13, %14 : vector<128x128xf32>
    %16 = arith.truncf %15 : vector<128x128xf32> to vector<128x128xbf16>
    %cst_12 = arith.constant dense<0.000000e+00> : vector<128x128xf32>
    %17 = tpu.matmul %0, %16, %cst_12 {dimension_numbers = #tpu.dot_dimension_numbers<[1], [0], [0], [1], [0, 0, 1, 1], [], []>} : vector<128x128xbf16>, vector<128x128xbf16>, vector<128x128xf32> -> vector<128x128xf32>
    %18 = arith.truncf %17 : vector<128x128xf32> to vector<128x128xbf16>
    %cst_13 = arith.constant dense<0.000000e+00> : vector<128x128xf32>
    %19 = tpu.matmul %18, %5, %cst_13 {dimension_numbers = #tpu.dot_dimension_numbers<[1], [0], [0], [1], [0, 0, 1, 1], [], []>} : vector<128x128xbf16>, vector<128x128xbf16>, vector<128x128xf32> -> vector<128x128xf32>
    %20 = vector.broadcast %8 : vector<1x128xf32> to vector<128x128xf32>
    %21 = arith.addf %19, %20 : vector<128x128xf32>
    %c0_14 = arith.constant 0 : index
    %c0_15 = arith.constant 0 : index
    %22 = vector.load %arg4[%c0_14, %c0_15] : memref<128x128xf32, #tpu.memory_space<vmem>>, vector<128x128xf32>
    tpu.vector_store %arg4[%c0_14, %c0_15], %21 {strides = array<i32>} : memref<128x128xf32, #tpu.memory_space<vmem>>, vector<128x128xf32>,
    return
  }
}

</mosaic_0001>

<llo_original>
// kernel: _gcn_pallas.1
$region0: #{_gcn_pallas.1}
  #allocation0 [shape = 'u32[]', space=smem, size = 0x4, offset = 0x4, fixed_abs, tag = 'smem constant byte address 0x4 - core index']
  #allocation1 [shape = 'u32[72,128]{1,0:T(1,128)}', space=vmem, size = 0x9000, scoped, tag = 'internal scratch']
  %s0 = inlined_call_operand.hbm [shape: bf16[128,128], index: 0, kind: input, shape index: {}]
  %s1 = inlined_call_operand.hbm [shape: bf16[128,128], index: 1, kind: input, shape index: {}]
  %s2 = inlined_call_operand.hbm [shape: bf16[2,128,128], index: 2, kind: input, shape index: {}]
  %s3 = inlined_call_operand.vmem [shape: f32[2,128], index: 3, kind: input, shape index: {}]
  %s4 = inlined_call_operand.hbm [shape: f32[128,128], index: 4, kind: output, shape index: {}]
  %s5 = sld [smem:[#allocation0]]
  $region38: #{_gcn_pallas.1} parent=0
    _
  %s7 = ssub.s32 1, %s5
  %s8 = scalar_select 0, %s7, %s5
  $region1: #{_gcn_pallas.1} parent=0
    #allocation2 [shape = 'u8[32768]{0}', space=vmem, size = 0x8000, scoped, tag = 'input window, operand 0, single buffered']
    #allocation3 [shape = 's32[1]{0}', space=sflag, size = 0x4, scoped, tag = 'scoped memory for _gcn_pallas.1']
    #allocation4 [shape = 's32[1]{0}', space=sflag, size = 0x4, scoped, tag = 'scoped memory for _gcn_pallas.1']
    #allocation5 [shape = 'u8[32768]{0}', space=vmem, size = 0x8000, scoped, tag = 'input window, operand 1, single buffered']
    #allocation6 [shape = 's32[1]{0}', space=sflag, size = 0x4, scoped, tag = 'scoped memory for _gcn_pallas.1']
    #allocation7 [shape = 'u8[65536]{0}', space=vmem, size = 0x10000, scoped, tag = 'input window, operand 2, single buffered']
    #allocation8 [shape = 'u8[65536]{0}', space=vmem, size = 0x10000, scoped, tag = 'output window, operand 0, single buffered']
    %9 = vsyncpa [#allocation3], 0
    %10 = vsyncpa [#allocation6], 0
    %11 = vsyncpa [#allocation4], 0
    // Predicated region
    $region2: #{_gcn_pallas.1} parent=1 // pred_check
      _
    $region3: #{_gcn_pallas.1} parent=1 // pred_check_branch
      %13 = sbr.rel (0) target = $region5
    $region4: #{_gcn_pallas.1} parent=1 // pred_region
      %15 = vsyncadd [#allocation3], 0
      %s16 = sshll.u32 %s0, 4
      %s17 = int_to_ptr.hbm [resolvable:$true] %s16
      %s18 = sshll.u32 [#allocation2], 4
      %s19 = int_to_ptr.vmem [resolvable:$true] %s18
      %24 = dma.hbm_to_vmem [thread:$0]  %s17, 1024, %s19, [#allocation3], 64, 64, 4
    $region5: #{_gcn_pallas.1} parent=1 // pred_fallthru
      _
    // Predicated region
    $region6: #{_gcn_pallas.1} parent=1 // pred_check
      _
    $region7: #{_gcn_pallas.1} parent=1 // pred_check_branch
      %26 = sbr.rel (0) target = $region9
    $region8: #{_gcn_pallas.1} parent=1 // pred_region
      %28 = vsyncadd [#allocation6], 0
      %s29 = sshll.u32 %s1, 4
      %s30 = int_to_ptr.hbm [resolvable:$true] %s29
      %s31 = sshll.u32 [#allocation5], 4
      %s32 = int_to_ptr.vmem [resolvable:$true] %s31
      %37 = dma.hbm_to_vmem [thread:$0]  %s30, 1024, %s32, [#allocation6], 64, 64, 4
    $region9: #{_gcn_pallas.1} parent=1 // pred_fallthru
      _
    // Predicated region
    $region10: #{_gcn_pallas.1} parent=1 // pred_check
      _
    $region11: #{_gcn_pallas.1} parent=1 // pred_check_branch
      %39 = sbr.rel (0) target = $region13
    $region12: #{_gcn_pallas.1} parent=1 // pred_region
      %41 = vsyncadd [#allocation6], 0
      %s42 = sshll.u32 %s2, 4
      %s43 = int_to_ptr.hbm [resolvable:$true] %s42
      %s44 = sshll.u32 [#allocation7], 4
      %s45 = int_to_ptr.vmem [resolvable:$true] %s44
      %50 = dma.hbm_to_vmem [thread:$0]  %s43, 2048, %s45, [#allocation6], 64, 64, 4
    $region13: #{_gcn_pallas.1} parent=1 // pred_fallthru
      _
    // Predicated region
    $region14: #{_gcn_pallas.1} parent=1 // pred_check
      _
    $region15: #{_gcn_pallas.1} parent=1 // pred_check_branch
      %52 = sbr.rel (0) target = $region17
    $region16: #{_gcn_pallas.1} parent=1 // pred_region
      _
    $region17: #{_gcn_pallas.1} parent=1 // pred_fallthru
      _
    // Predicated region
    $region18: #{_gcn_pallas.1} parent=1 // pred_check
      _
    $region19: #{_gcn_pallas.1} parent=1 // pred_check_branch
      %54 = sbr.rel (0) target = $region21
    $region20: #{_gcn_pallas.1} parent=1 // pred_region
      %56 = dma.done [#allocation3], 1024
    $region21: #{_gcn_pallas.1} parent=1 // pred_fallthru
      _
    // Predicated region
    $region22: #{_gcn_pallas.1} parent=1 // pred_check
      _
    $region23: #{_gcn_pallas.1} parent=1 // pred_check_branch
      %58 = sbr.rel (0) target = $region25
    $region24: #{_gcn_pallas.1} parent=1 // pred_region
      %60 = dma.done [#allocation6], 1024
    $region25: #{_gcn_pallas.1} parent=1 // pred_fallthru
      _
    // Predicated region
    $region26: #{_gcn_pallas.1} parent=1 // pred_check
      _
    $region27: #{_gcn_pallas.1} parent=1 // pred_check_branch
      %62 = sbr.rel (0) target = $region29
    $region28: #{_gcn_pallas.1} parent=1 // pred_region
      %64 = dma.done [#allocation6], 2048
    $region29: #{_gcn_pallas.1} parent=1 // pred_fallthru
      _
    %v65 = vld [vmem:[#allocation2] sm:$0xf]
    %v66 = vld [vmem:[#allocation2 + $0x4] sm:$0xf]
    %v67 = vld [vmem:[#allocation2 + $0x8] sm:$0xf]
    %v68 = vld [vmem:[#allocation2 + $0xc] sm:$0xf]
    %v69 = vld [vmem:[#allocation2 + $0x10] sm:$0xf]
    %v70 = vld [vmem:[#allocation2 + $0x14] sm:$0xf]
    %v71 = vld [vmem:[#allocation2 + $0x18] sm:$0xf]
    %v72 = vld [vmem:[#allocation2 + $0x1c] sm:$0xf]
    %v73 = vld [vmem:[#allocation2 + $0x20] sm:$0xf]
    %v74 = vld [vmem:[#allocation2 + $0x24] sm:$0xf]
    %v75 = vld [vmem:[#allocation2 + $0x28] sm:$0xf]
    %v76 = vld [vmem:[#allocation2 + $0x2c] sm:$0xf]
    %v77 = vld [vmem:[#allocation2 + $0x30] sm:$0xf]
    %v78 = vld [vmem:[#allocation2 + $0x34] sm:$0xf]
    %v79 = vld [vmem:[#allocation2 + $0x38] sm:$0xf]
    %v80 = vld [vmem:[#allocation2 + $0x3c] sm:$0xf]
    %v81 = vld [vmem:[#allocation5] sm:$0xf]
    %v82 = vld [vmem:[#allocation5 + $0x4] sm:$0xf]
    %v83 = vld [vmem:[#allocation5 + $0x8] sm:$0xf]
    %v84 = vld [vmem:[#allocation5 + $0xc] sm:$0xf]
    %v85 = vld [vmem:[#allocation5 + $0x10] sm:$0xf]
    %v86 = vld [vmem:[#allocation5 + $0x14] sm:$0xf]
    %v87 = vld [vmem:[#allocation5 + $0x18] sm:$0xf]
    %v88 = vld [vmem:[#allocation5 + $0x1c] sm:$0xf]
    %v89 = vld [vmem:[#allocation5 + $0x20] sm:$0xf]
    %v90 = vld [vmem:[#allocation5 + $0x24] sm:$0xf]
    %v91 = vld [vmem:[#allocation5 + $0x28] sm:$0xf]
    %v92 = vld [vmem:[#allocation5 + $0x2c] sm:$0xf]
    %v93 = vld [vmem:[#allocation5 + $0x30] sm:$0xf]
    %v94 = vld [vmem:[#allocation5 + $0x34] sm:$0xf]
    %v95 = vld [vmem:[#allocation5 + $0x38] sm:$0xf]
    %v96 = vld [vmem:[#allocation5 + $0x3c] sm:$0xf]
    %v97 = vld [vmem:[#allocation7] sm:$0xf]
    %v98 = vld [vmem:[#allocation7 + $0x4] sm:$0xf]
    %v99 = vld [vmem:[#allocation7 + $0x8] sm:$0xf]
    %v100 = vld [vmem:[#allocation7 + $0xc] sm:$0xf]
    %v101 = vld [vmem:[#allocation7 + $0x10] sm:$0xf]
    %v102 = vld [vmem:[#allocation7 + $0x14] sm:$0xf]
    %v103 = vld [vmem:[#allocation7 + $0x18] sm:$0xf]
    %v104 = vld [vmem:[#allocation7 + $0x1c] sm:$0xf]
    %v105 = vld [vmem:[#allocation7 + $0x20] sm:$0xf]
    %v106 = vld [vmem:[#allocation7 + $0x24] sm:$0xf]
    %v107 = vld [vmem:[#allocation7 + $0x28] sm:$0xf]
    %v108 = vld [vmem:[#allocation7 + $0x2c] sm:$0xf]
    %v109 = vld [vmem:[#allocation7 + $0x30] sm:$0xf]
    %v110 = vld [vmem:[#allocation7 + $0x34] sm:$0xf]
    %v111 = vld [vmem:[#allocation7 + $0x38] sm:$0xf]
    %v112 = vld [vmem:[#allocation7 + $0x3c] sm:$0xf]
    %s113 = scalar_lea.vmem [#allocation7], 64
    %v114 = vld [vmem:[%s113] sm:$0xf]
    %v115 = vld [vmem:[%s113 + $0x4] sm:$0xf]
    %v116 = vld [vmem:[%s113 + $0x8] sm:$0xf]
    %v117 = vld [vmem:[%s113 + $0xc] sm:$0xf]
    %v118 = vld [vmem:[%s113 + $0x10] sm:$0xf]
    %v119 = vld [vmem:[%s113 + $0x14] sm:$0xf]
    %v120 = vld [vmem:[%s113 + $0x18] sm:$0xf]
    %v121 = vld [vmem:[%s113 + $0x1c] sm:$0xf]
    %v122 = vld [vmem:[%s113 + $0x20] sm:$0xf]
    %v123 = vld [vmem:[%s113 + $0x24] sm:$0xf]
    %v124 = vld [vmem:[%s113 + $0x28] sm:$0xf]
    %v125 = vld [vmem:[%s113 + $0x2c] sm:$0xf]
    %v126 = vld [vmem:[%s113 + $0x30] sm:$0xf]
    %v127 = vld [vmem:[%s113 + $0x34] sm:$0xf]
    %v128 = vld [vmem:[%s113 + $0x38] sm:$0xf]
    %v129 = vld [vmem:[%s113 + $0x3c] sm:$0xf]
    %v130 = vld [vmem:[%s3] sm:$0x3]
    %v147 = vunpack.c.l.b16 %v81
    %v148 = vunpack.c.l.b16 %v82
    %v149 = vunpack.c.l.b16 %v83
    %v150 = vunpack.c.l.b16 %v84
    %v151 = vunpack.c.l.b16 %v85
    %v152 = vunpack.c.l.b16 %v86
    %v153 = vunpack.c.l.b16 %v87
    %v154 = vunpack.c.l.b16 %v88
    %v155 = vunpack.c.l.b16 %v89
    %v156 = vunpack.c.l.b16 %v90
    %v157 = vunpack.c.l.b16 %v91
    %v158 = vunpack.c.l.b16 %v92
    %v159 = vunpack.c.l.b16 %v93
    %v160 = vunpack.c.l.b16 %v94
    %v161 = vunpack.c.l.b16 %v95
    %v162 = vunpack.c.l.b16 %v96
    %v163 = vpack.c.b16 %v148, %v147
    %v164 = vpack.c.b16 %v150, %v149
    %v165 = vpack.c.b16 %v152, %v151
    %v166 = vpack.c.b16 %v154, %v153
    %v167 = vpack.c.b16 %v156, %v155
    %v168 = vpack.c.b16 %v158, %v157
    %v169 = vpack.c.b16 %v160, %v159
    %v170 = vpack.c.b16 %v162, %v161
    %v195 = vunpack.c.l.b16 %v97
    %v196 = vunpack.c.l.b16 %v98
    %v197 = vunpack.c.l.b16 %v99
    %v198 = vunpack.c.l.b16 %v100
    %v199 = vunpack.c.l.b16 %v101
    %v200 = vunpack.c.l.b16 %v102
    %v201 = vunpack.c.l.b16 %v103
    %v202 = vunpack.c.l.b16 %v104
    %v203 = vunpack.c.l.b16 %v105
    %v204 = vunpack.c.l.b16 %v106
    %v205 = vunpack.c.l.b16 %v107
    %v206 = vunpack.c.l.b16 %v108
    %v207 = vunpack.c.l.b16 %v109
    %v208 = vunpack.c.l.b16 %v110
    %v209 = vunpack.c.l.b16 %v111
    %v210 = vunpack.c.l.b16 %v112
    %v211 = vpack.c.b16 %v196, %v195
    %v212 = vpack.c.b16 %v198, %v197
    %v213 = vpack.c.b16 %v200, %v199
    %v214 = vpack.c.b16 %v202, %v201
    %v215 = vpack.c.b16 %v204, %v203
    %v216 = vpack.c.b16 %v206, %v205
    %v217 = vpack.c.b16 %v208, %v207
    %v218 = vpack.c.b16 %v210, %v209
    %227 = vmatpush.bf16.msra.mxu0 %v218
    %228 = vmatpush.bf16.msra.mxu0 %v217
    %229 = vmatpush.bf16.msra.mxu0 %v216
    %230 = vmatpush.bf16.msra.mxu0 %v215
    %231 = vmatpush.bf16.msra.mxu0 %v214
    %232 = vmatpush.bf16.msra.mxu0 %v213
    %233 = vmatpush.bf16.msra.mxu0 %v212
    %234 = vmatpush.bf16.msra.mxu0 %v211
    %235 = vmatmul.bf16.gmra.mxu0 %v163
    %v236 = vpop.f32.mrf.mxu0
    %v237 = vadd.f32 0.0, %v236
    %v238 = vpop.f32.mrf.mxu0
    %v239 = vadd.f32 0.0, %v238
    %240 = vmatmul.bf16.gmra.mxu0 %v164
    %v241 = vpop.f32.mrf.mxu0
    %v242 = vadd.f32 0.0, %v241
    %v243 = vpop.f32.mrf.mxu0
    %v244 = vadd.f32 0.0, %v243
    %245 = vmatmul.bf16.gmra.mxu0 %v165
    %v246 = vpop.f32.mrf.mxu0
    %v247 = vadd.f32 0.0, %v246
    %v248 = vpop.f32.mrf.mxu0
    %v249 = vadd.f32 0.0, %v248
    %250 = vmatmul.bf16.gmra.mxu0 %v166
    %v251 = vpop.f32.mrf.mxu0
    %v252 = vadd.f32 0.0, %v251
    %v253 = vpop.f32.mrf.mxu0
    %v254 = vadd.f32 0.0, %v253
    %255 = vmatmul.bf16.gmra.mxu0 %v167
    %v256 = vpop.f32.mrf.mxu0
    %v257 = vadd.f32 0.0, %v256
    %v258 = vpop.f32.mrf.mxu0
    %v259 = vadd.f32 0.0, %v258
    %260 = vmatmul.bf16.gmra.mxu0 %v168
    %v261 = vpop.f32.mrf.mxu0
    %v262 = vadd.f32 0.0, %v261
    %v263 = vpop.f32.mrf.mxu0
    %v264 = vadd.f32 0.0, %v263
    %265 = vmatmul.bf16.gmra.mxu0 %v169
    %v266 = vpop.f32.mrf.mxu0
    %v267 = vadd.f32 0.0, %v266
    %v268 = vpop.f32.mrf.mxu0
    %v269 = vadd.f32 0.0, %v268
    %270 = vmatmul.bf16.gmra.mxu0 %v170
    %v271 = vpop.f32.mrf.mxu0
    %v272 = vadd.f32 0.0, %v271
    %v273 = vpop.f32.mrf.mxu0
    %v274 = vadd.f32 0.0, %v273
    %275 = vdwg.mxu0
    %v276 = vpack.c.bf16 %v239, %v237
    %v277 = vpack.c.bf16 %v244, %v242
    %v278 = vpack.c.bf16 %v249, %v247
    %v279 = vpack.c.bf16 %v254, %v252
    %v280 = vpack.c.bf16 %v259, %v257
    %v281 = vpack.c.bf16 %v264, %v262
    %v282 = vpack.c.bf16 %v269, %v267
    %v283 = vpack.c.bf16 %v274, %v272
    %v284 = vperm.slane %v130, 0
    %v301 = vunpack.c.l.b16 %v65
    %v302 = vunpack.c.l.b16 %v66
    %v303 = vunpack.c.l.b16 %v67
    %v304 = vunpack.c.l.b16 %v68
    %v305 = vunpack.c.l.b16 %v69
    %v306 = vunpack.c.l.b16 %v70
    %v307 = vunpack.c.l.b16 %v71
    %v308 = vunpack.c.l.b16 %v72
    %v309 = vunpack.c.l.b16 %v73
    %v310 = vunpack.c.l.b16 %v74
    %v311 = vunpack.c.l.b16 %v75
    %v312 = vunpack.c.l.b16 %v76
    %v313 = vunpack.c.l.b16 %v77
    %v314 = vunpack.c.l.b16 %v78
    %v315 = vunpack.c.l.b16 %v79
    %v316 = vunpack.c.l.b16 %v80
    %v317 = vpack.c.b16 %v302, %v301
    %v318 = vpack.c.b16 %v304, %v303
    %v319 = vpack.c.b16 %v306, %v305
    %v320 = vpack.c.b16 %v308, %v307
    %v321 = vpack.c.b16 %v310, %v309
    %v322 = vpack.c.b16 %v312, %v311
    %v323 = vpack.c.b16 %v314, %v313
    %v324 = vpack.c.b16 %v316, %v315
    %333 = vmatpush.bf16.msra.mxu0 %v283
    %334 = vmatpush.bf16.msra.mxu0 %v282
    %335 = vmatpush.bf16.msra.mxu0 %v281
    %336 = vmatpush.bf16.msra.mxu0 %v280
    %337 = vmatpush.bf16.msra.mxu0 %v279
    %338 = vmatpush.bf16.msra.mxu0 %v278
    %339 = vmatpush.bf16.msra.mxu0 %v277
    %340 = vmatpush.bf16.msra.mxu0 %v276
    %341 = vmatmul.bf16.gmra.mxu0 %v317
    %v342 = vpop.f32.mrf.mxu0
    %v343 = vadd.f32 %v284, %v342
    %v344 = vpop.f32.mrf.mxu0
    %v345 = vadd.f32 %v284, %v344
    %346 = vmatmul.bf16.gmra.mxu0 %v318
    %v347 = vpop.f32.mrf.mxu0
    %v348 = vadd.f32 %v284, %v347
    %v349 = vpop.f32.mrf.mxu0
    %v350 = vadd.f32 %v284, %v349
    %351 = vmatmul.bf16.gmra.mxu0 %v319
    %v352 = vpop.f32.mrf.mxu0
    %v353 = vadd.f32 %v284, %v352
    %v354 = vpop.f32.mrf.mxu0
    %v355 = vadd.f32 %v284, %v354
    %356 = vmatmul.bf16.gmra.mxu0 %v320
    %v357 = vpop.f32.mrf.mxu0
    %v358 = vadd.f32 %v284, %v357
    %v359 = vpop.f32.mrf.mxu0
    %v360 = vadd.f32 %v284, %v359
    %361 = vmatmul.bf16.gmra.mxu0 %v321
    %v362 = vpop.f32.mrf.mxu0
    %v363 = vadd.f32 %v284, %v362
    %v364 = vpop.f32.mrf.mxu0
    %v365 = vadd.f32 %v284, %v364
    %366 = vmatmul.bf16.gmra.mxu0 %v322
    %v367 = vpop.f32.mrf.mxu0
    %v368 = vadd.f32 %v284, %v367
    %v369 = vpop.f32.mrf.mxu0
    %v370 = vadd.f32 %v284, %v369
    %371 = vmatmul.bf16.gmra.mxu0 %v323
    %v372 = vpop.f32.mrf.mxu0
    %v373 = vadd.f32 %v284, %v372
    %v374 = vpop.f32.mrf.mxu0
    %v375 = vadd.f32 %v284, %v374
    %376 = vmatmul.bf16.gmra.mxu0 %v324
    %v377 = vpop.f32.mrf.mxu0
    %v378 = vadd.f32 %v284, %v377
    %v379 = vpop.f32.mrf.mxu0
    %v380 = vadd.f32 %v284, %v379
    %381 = vdwg.mxu0
    %v382 = vmax.f32 %v343, 0.0
    %v383 = vmax.f32 %v345, 0.0
    %v384 = vmax.f32 %v348, 0.0
    %v385 = vmax.f32 %v350, 0.0
    %v386 = vmax.f32 %v353, 0.0
    %v387 = vmax.f32 %v355, 0.0
    %v388 = vmax.f32 %v358, 0.0
    %v389 = vmax.f32 %v360, 0.0
    %v390 = vmax.f32 %v363, 0.0
    %v391 = vmax.f32 %v365, 0.0
    %v392 = vmax.f32 %v368, 0.0
    %v393 = vmax.f32 %v370, 0.0
    %v394 = vmax.f32 %v373, 0.0
    %v395 = vmax.f32 %v375, 0.0
    %v396 = vmax.f32 %v378, 0.0
    %v397 = vmax.f32 %v380, 0.0
    %v398 = vpack.c.bf16 %v383, %v382
    %v399 = vpack.c.bf16 %v385, %v384
    %v400 = vpack.c.bf16 %v387, %v386
    %v401 = vpack.c.bf16 %v389, %v388
    %v402 = vpack.c.bf16 %v391, %v390
    %v403 = vpack.c.bf16 %v393, %v392
    %v404 = vpack.c.bf16 %v395, %v394
    %v405 = vpack.c.bf16 %v397, %v396
    %406 = vmatpush.bf16.msra.mxu0 %v405
    %407 = vmatpush.bf16.msra.mxu0 %v404
    %408 = vmatpush.bf16.msra.mxu0 %v403
    %409 = vmatpush.bf16.msra.mxu0 %v402
    %410 = vmatpush.bf16.msra.mxu0 %v401
    %411 = vmatpush.bf16.msra.mxu0 %v400
    %412 = vmatpush.bf16.msra.mxu0 %v399
    %413 = vmatpush.bf16.msra.mxu0 %v398
    %414 = vmatmul.bf16.gmra.mxu0 %v317
    %v415 = vpop.f32.mrf.mxu0
    %v416 = vadd.f32 0.0, %v415
    %v417 = vpop.f32.mrf.mxu0
    %v418 = vadd.f32 0.0, %v417
    %419 = vmatmul.bf16.gmra.mxu0 %v318
    %v420 = vpop.f32.mrf.mxu0
    %v421 = vadd.f32 0.0, %v420
    %v422 = vpop.f32.mrf.mxu0
    %v423 = vadd.f32 0.0, %v422
    %424 = vmatmul.bf16.gmra.mxu0 %v319
    %v425 = vpop.f32.mrf.mxu0
    %v426 = vadd.f32 0.0, %v425
    %v427 = vpop.f32.mrf.mxu0
    %v428 = vadd.f32 0.0, %v427
    %429 = vmatmul.bf16.gmra.mxu0 %v320
    %v430 = vpop.f32.mrf.mxu0
    %v431 = vadd.f32 0.0, %v430
    %v432 = vpop.f32.mrf.mxu0
    %v433 = vadd.f32 0.0, %v432
    %434 = vmatmul.bf16.gmra.mxu0 %v321
    %v435 = vpop.f32.mrf.mxu0
    %v436 = vadd.f32 0.0, %v435
    %v437 = vpop.f32.mrf.mxu0
    %v438 = vadd.f32 0.0, %v437
    %439 = vmatmul.bf16.gmra.mxu0 %v322
    %v440 = vpop.f32.mrf.mxu0
    %v441 = vadd.f32 0.0, %v440
    %v442 = vpop.f32.mrf.mxu0
    %v443 = vadd.f32 0.0, %v442
    %444 = vmatmul.bf16.gmra.mxu0 %v323
    %v445 = vpop.f32.mrf.mxu0
    %v446 = vadd.f32 0.0, %v445
    %v447 = vpop.f32.mrf.mxu0
    %v448 = vadd.f32 0.0, %v447
    %449 = vmatmul.bf16.gmra.mxu0 %v324
    %v450 = vpop.f32.mrf.mxu0
    %v451 = vadd.f32 0.0, %v450
    %v452 = vpop.f32.mrf.mxu0
    %v453 = vadd.f32 0.0, %v452
    %454 = vdwg.mxu0
    %v455 = vpack.c.bf16 %v418, %v416
    %v456 = vpack.c.bf16 %v423, %v421
    %v457 = vpack.c.bf16 %v428, %v426
    %v458 = vpack.c.bf16 %v433, %v431
    %v459 = vpack.c.bf16 %v438, %v436
    %v460 = vpack.c.bf16 %v443, %v441
    %v461 = vpack.c.bf16 %v448, %v446
    %v462 = vpack.c.bf16 %v453, %v451
    %v463 = vperm.slane %v130, 1
    %v480 = vunpack.c.l.b16 %v114
    %v481 = vunpack.c.l.b16 %v115
    %v482 = vunpack.c.l.b16 %v116
    %v483 = vunpack.c.l.b16 %v117
    %v484 = vunpack.c.l.b16 %v118
    %v485 = vunpack.c.l.b16 %v119
    %v486 = vunpack.c.l.b16 %v120
    %v487 = vunpack.c.l.b16 %v121
    %v488 = vunpack.c.l.b16 %v122
    %v489 = vunpack.c.l.b16 %v123
    %v490 = vunpack.c.l.b16 %v124
    %v491 = vunpack.c.l.b16 %v125
    %v492 = vunpack.c.l.b16 %v126
    %v493 = vunpack.c.l.b16 %v127
    %v494 = vunpack.c.l.b16 %v128
    %v495 = vunpack.c.l.b16 %v129
    %v496 = vpack.c.b16 %v481, %v480
    %v497 = vpack.c.b16 %v483, %v482
    %v498 = vpack.c.b16 %v485, %v484
    %v499 = vpack.c.b16 %v487, %v486
    %v500 = vpack.c.b16 %v489, %v488
    %v501 = vpack.c.b16 %v491, %v490
    %v502 = vpack.c.b16 %v493, %v492
    %v503 = vpack.c.b16 %v495, %v494
    %512 = vmatpush.bf16.msra.mxu0 %v503
    %513 = vmatpush.bf16.msra.mxu0 %v502
    %514 = vmatpush.bf16.msra.mxu0 %v501
    %515 = vmatpush.bf16.msra.mxu0 %v500
    %516 = vmatpush.bf16.msra.mxu0 %v499
    %517 = vmatpush.bf16.msra.mxu0 %v498
    %518 = vmatpush.bf16.msra.mxu0 %v497
    %519 = vmatpush.bf16.msra.mxu0 %v496
    %520 = vmatmul.bf16.gmra.mxu0 %v455
    %v521 = vpop.f32.mrf.mxu0
    %v522 = vadd.f32 %v463, %v521
    %v523 = vpop.f32.mrf.mxu0
    %v524 = vadd.f32 %v463, %v523
    %525 = vmatmul.bf16.gmra.mxu0 %v456
    %v526 = vpop.f32.mrf.mxu0
    %v527 = vadd.f32 %v463, %v526
    %v528 = vpop.f32.mrf.mxu0
    %v529 = vadd.f32 %v463, %v528
    %530 = vmatmul.bf16.gmra.mxu0 %v457
    %v531 = vpop.f32.mrf.mxu0
    %v532 = vadd.f32 %v463, %v531
    %v533 = vpop.f32.mrf.mxu0
    %v534 = vadd.f32 %v463, %v533
    %535 = vmatmul.bf16.gmra.mxu0 %v458
    %v536 = vpop.f32.mrf.mxu0
    %v537 = vadd.f32 %v463, %v536
    %v538 = vpop.f32.mrf.mxu0
    %v539 = vadd.f32 %v463, %v538
    %540 = vmatmul.bf16.gmra.mxu0 %v459
    %v541 = vpop.f32.mrf.mxu0
    %v542 = vadd.f32 %v463, %v541
    %v543 = vpop.f32.mrf.mxu0
    %v544 = vadd.f32 %v463, %v543
    %545 = vmatmul.bf16.gmra.mxu0 %v460
    %v546 = vpop.f32.mrf.mxu0
    %v547 = vadd.f32 %v463, %v546
    %v548 = vpop.f32.mrf.mxu0
    %v549 = vadd.f32 %v463, %v548
    %550 = vmatmul.bf16.gmra.mxu0 %v461
    %v551 = vpop.f32.mrf.mxu0
    %v552 = vadd.f32 %v463, %v551
    %v553 = vpop.f32.mrf.mxu0
    %v554 = vadd.f32 %v463, %v553
    %555 = vmatmul.bf16.gmra.mxu0 %v462
    %v556 = vpop.f32.mrf.mxu0
    %v557 = vadd.f32 %v463, %v556
    %v558 = vpop.f32.mrf.mxu0
    %v559 = vadd.f32 %v463, %v558
    %560 = vdwg.mxu0
    %561 = vst [vmem:[#allocation8] sm:$0xff] %v522
    %562 = vst [vmem:[#allocation8 + $0x8] sm:$0xff] %v524
    %563 = vst [vmem:[#allocation8 + $0x10] sm:$0xff] %v527
    %564 = vst [vmem:[#allocation8 + $0x18] sm:$0xff] %v529
    %565 = vst [vmem:[#allocation8 + $0x20] sm:$0xff] %v532
    %566 = vst [vmem:[#allocation8 + $0x28] sm:$0xff] %v534
    %567 = vst [vmem:[#allocation8 + $0x30] sm:$0xff] %v537
    %568 = vst [vmem:[#allocation8 + $0x38] sm:$0xff] %v539
    %569 = vst [vmem:[#allocation8 + $0x40] sm:$0xff] %v542
    %570 = vst [vmem:[#allocation8 + $0x48] sm:$0xff] %v544
    %571 = vst [vmem:[#allocation8 + $0x50] sm:$0xff] %v547
    %572 = vst [vmem:[#allocation8 + $0x58] sm:$0xff] %v549
    %573 = vst [vmem:[#allocation8 + $0x60] sm:$0xff] %v552
    %574 = vst [vmem:[#allocation8 + $0x68] sm:$0xff] %v554
    %575 = vst [vmem:[#allocation8 + $0x70] sm:$0xff] %v557
    %576 = vst [vmem:[#allocation8 + $0x78] sm:$0xff] %v559
    // Predicated region
    $region30: #{_gcn_pallas.1} parent=1 // pred_check
      _
    $region31: #{_gcn_pallas.1} parent=1 // pred_check_branch
      %578 = sbr.rel (0) target = $region33
    $region32: #{_gcn_pallas.1} parent=1 // pred_region
      %580 = vsyncadd [#allocation4], 0
      %s581 = sshll.u32 [#allocation8], 4
      %s582 = int_to_ptr.vmem [resolvable:$true] %s581
      %s583 = sshll.u32 %s4, 4
      %s584 = int_to_ptr.hbm [resolvable:$true] %s583
      %589 = dma.vmem_to_hbm [thread:$0]  %s582, 2048, %s584, [#allocation4], 128, 128, 8
    $region33: #{_gcn_pallas.1} parent=1 // pred_fallthru
      _
    // Predicated region
    $region34: #{_gcn_pallas.1} parent=1 // pred_check
      _
    $region35: #{_gcn_pallas.1} parent=1 // pred_check_branch
      %591 = sbr.rel (0) target = $region37
    $region36: #{_gcn_pallas.1} parent=1 // pred_region
      %593 = dma.done [#allocation4], 2048
    $region37: #{_gcn_pallas.1} parent=1 // pred_fallthru
      _
    %594 = vsyncpa [#allocation3], 1
    %595 = vsyncpa [#allocation6], 1
    %596 = vsyncpa [#allocation4], 1

</llo_original>
